<compile_context>
chip_gen: v6e
topology: v6e:2x2x1
jax: 0.10.0
libtpu: 0.0.40
codegen_flags: <defaults>
</compile_context>

<pallas_src>
import functools

import jax
import jax.numpy as jnp
from jax import lax
from jax.experimental import pallas as pl
from jax.experimental.pallas import tpu as pltpu

_EPS = 1e-5
_LANE = 128


def _round_up(v, m):
    return -(-v // m) * m


def _pick_row_tile(m, max_tile=512):
    """Largest row tile <= max_tile that divides m exactly (exact => no garbage rows)."""
    for t in (512, 256, 128, 64, 32, 16, 8):
        if t <= max_tile and m % t == 0:
            return t
    return m


def _vmem_limit(nbytes):
    """Explicit scoped-VMEM budget: actual block bytes + headroom, clamped to the chip."""
    try:
        cap = int(pltpu.get_tpu_info().vmem_capacity_bytes)
    except Exception:
        cap = 64 << 20  # v7x physical per-TC VMEM; safe lower bound for all gens
    return int(min(max(nbytes + (4 << 20), 8 << 20), int(cap * 0.9)))


# --------------------------------------------------------------------------------------
# BatchNorm statistics: per-channel mean and rsqrt(var + eps), reduced over N*D*H*W.
# Optionally applied to relu(b*x + c) instead of x (needed for the downsample BN, whose
# input is relu(bn1(x))) so that no normalized activation has to be materialized.
# --------------------------------------------------------------------------------------

def _bn_stats_kernel(*refs, relu, eps, m_total, has_pre):
    if has_pre:
        x_ref, pre_ref, mean_ref, scale_ref, sum_ref, sq_ref = refs
    else:
        x_ref, mean_ref, scale_ref, sum_ref, sq_ref = refs
        pre_ref = None

    i = pl.program_id(0)

    @pl.when(i == 0)
    def _init():
        sum_ref[...] = jnp.zeros_like(sum_ref)
        sq_ref[...] = jnp.zeros_like(sq_ref)

    x = x_ref[...].astype(jnp.float32)                       # (tm, C)
    if has_pre:
        b = pre_ref[0:1, :]
        c = pre_ref[1:2, :]
        x = x * b + c
        if relu:
            x = jnp.maximum(x, 0.0)

    sum_ref[...] += jnp.sum(x, axis=0, keepdims=True)
    sq_ref[...] += jnp.sum(x * x, axis=0, keepdims=True)

    @pl.when(i == pl.num_programs(0) - 1)
    def _finalize():
        mean = sum_ref[...] / m_total
        var = jnp.maximum(sq_ref[...] / m_total - mean * mean, 0.0)  # biased var
        mean_ref[...] = mean
        scale_ref[...] = lax.rsqrt(var + eps)


def bn_stats(x, pre=None, *, relu=False, eps=_EPS):
    """x: (..., C) -> (mean, rsqrt(var+eps)), each (1, C), reduced over all leading dims.

    If `pre` (2, C) is given, statistics are taken of relu?(pre[0]*x + pre[1]) instead.
    Global (batch) statistics are accumulated across grid steps in VMEM scratch.
    """
    c = x.shape[-1]
    xf = x.reshape(-1, c)
    m = xf.shape[0]
    tm = _pick_row_tile(m)
    has_pre = pre is not None

    inputs = [xf]
    in_specs = [pl.BlockSpec((tm, c), lambda i: (i, 0))]
    if has_pre:
        inputs.append(pre.astype(jnp.float32))
        in_specs.append(pl.BlockSpec((2, c), lambda i: (0, 0)))

    kernel = functools.partial(_bn_stats_kernel, relu=relu, eps=eps,
                               m_total=float(m), has_pre=has_pre)
    mean, scale = pl.pallas_call(
        kernel,
        grid=(m // tm,),
        in_specs=in_specs,
        out_specs=(pl.BlockSpec((1, c), lambda i: (0, 0)),
                   pl.BlockSpec((1, c), lambda i: (0, 0))),
        out_shape=(jax.ShapeDtypeStruct((1, c), jnp.float32),
                   jax.ShapeDtypeStruct((1, c), jnp.float32)),
        scratch_shapes=[pltpu.VMEM((1, c), jnp.float32),
                        pltpu.VMEM((1, c), jnp.float32)],
        compiler_params=pltpu.CompilerParams(
            dimension_semantics=("arbitrary",),          # reduction axis
            vmem_limit_bytes=_vmem_limit(2 * tm * c * 4 + 8 * _LANE * 4),
        ),
    )(*inputs)
    return mean, scale


# --------------------------------------------------------------------------------------
# Fused (BN -> ReLU -> [BN] -> zero-pad -> Conv3d [-> +residual]) kernel.
#
# Per grid step (n, od) the kernel:
#   1. loads the K-deep depth window of the polyphase-split, spatially padded input,
#   2. applies the per-channel transform t(x) = a * relu?(b*x + c) + d  (this encodes
#      bn1+relu for conv1/conv2 and bn_d(relu(bn1(.))) for the downsample),
#   3. zeroes the conv-padding positions (so padding acts on the *normalized* tensor),
#   4. builds the im2col patch (Ho*Wo, K^3*Cin) in VMEM scratch (all slices unit-stride
#      thanks to the polyphase split -> native stride, no wasted MXU work),
#   5. runs ONE MXU matmul against the packed (K^3*Cin, Cout_pad) weights (f32 acc),
#   6. optionally adds the residual tile and stores a lane-dense (.., 128) output.
# --------------------------------------------------------------------------------------

def _conv_bn_kernel(*refs, k, s, pad, d_in, h_in, w_in, ho, wo, cin,
                    relu, has_res, compute_dtype):
    if has_res:
        x_ref, w_ref, t_ref, res_ref, o_ref, patch_ref = refs
    else:
        x_ref, w_ref, t_ref, o_ref, patch_ref = refs
        res_ref = None

    od = pl.program_id(1)
    d0 = od * s                                    # depth-window start (native stride)

    # (s*s phases, k depth taps, Hq, Wq, Cin)
    xb = x_ref[0, :, pl.ds(d0, k), :, :, :].astype(jnp.float32)

    # Per-channel transform t(x) = a * relu?(b*x + c) + d, hoisted loads.
    bcoef = t_ref[0:1, :]
    ccoef = t_ref[1:2, :]
    acoef = t_ref[2:3, :]
    dcoef = t_ref[3:4, :]
    y = xb * bcoef + ccoef
    if relu:
        y = jnp.maximum(y, 0.0)
    y = y * acoef + dcoef

    if pad > 0:
        # Conv zero-padding must apply to the *post-transform* activation: force the
        # padding positions (in global coordinates of the padded volume) to zero.
        shp = y.shape
        phase = lax.broadcasted_iota(jnp.int32, shp, 0)
        ph = phase // s
        pw = phase % s
        dg = lax.broadcasted_iota(jnp.int32, shp, 1) + d0
        hg = lax.broadcasted_iota(jnp.int32, shp, 2) * s + ph
        wg = lax.broadcasted_iota(jnp.int32, shp, 3) * s + pw
        interior = ((dg >= pad) & (dg < pad + d_in) &
                    (hg >= pad) & (hg < pad + h_in) &
                    (wg >= pad) & (wg < pad + w_in))
        y = jnp.where(interior, y, 0.0)

    y = y.astype(compute_dtype)

    rows = ho * wo
    t = 0
    for kd in range(k):
        for kh in range(k):
            for kw in range(k):
                phase_i = (kh % s) * s + (kw % s)
                piece = y[phase_i, kd,
                          kh // s: kh // s + ho,
                          kw // s: kw // s + wo, :]
                patch_ref[:, t * cin:(t + 1) * cin] = piece.reshape(rows, cin)
                t += 1

    # One packed, lane-dense MXU matmul (contraction = K^3*Cin, output lanes = 128*n).
    acc = jnp.dot(patch_ref[...], w_ref[...], preferred_element_type=jnp.float32)
    if has_res:
        acc = acc + res_ref[...].reshape(rows, -1).astype(jnp.float32)
    o_ref[...] = acc.reshape(o_ref.shape).astype(o_ref.dtype)


def conv3d_bn_fused(x, w, tparams, *, stride, padding, relu=True, residual=None,
                    compute_dtype=jnp.float32):
    """Fused BN/ReLU + Conv3d.

    x:        (N, D, H, W, Cin) raw (pre-BN) activation
    w:        (K, K, K, Cin, Cout) cross-correlation weights (DHWIO)
    tparams:  (4, Cin) rows [b, c, a, d]: per-channel transform a*relu?(b*x+c)+d
              applied to x before the convolution
    residual: optional (N, Do, Ho, Wo, Cout_pad) tensor added to the conv output
    returns:  (N, Do, Ho, Wo, Cout_pad) f32, channel-padded to a multiple of 128.
    """
    n, d_in, h_in, w_in, cin = x.shape
    k = w.shape[0]
    cout = w.shape[-1]
    s, p = stride, padding

    do = (d_in + 2 * p - k) // s + 1
    ho = (h_in + 2 * p - k) // s + 1
    wo = (w_in + 2 * p - k) // s + 1
    dp, hp, wp = d_in + 2 * p, h_in + 2 * p, w_in + 2 * p
    hq, wq = -(-hp // s), -(-wp // s)              # phase lengths (ceil)

    # Conv zero-pad + alignment pad so H, W divide by the stride (alignment region is
    # never read by any valid tap; padding positions are re-zeroed post-BN in-kernel).
    xp = jnp.pad(x, ((0, 0),
                     (p, p),
                     (p, p + hq * s - hp),
                     (p, p + wq * s - wp),
                     (0, 0)))
    # Polyphase split: (N, s*s, Dp, Hq, Wq, Cin); phase index = (h % s) * s + (w % s).
    x6 = xp.reshape(n, dp, hq, s, wq, s, cin)
    x6 = x6.transpose(0, 3, 5, 1, 2, 4, 6).reshape(n, s * s, dp, hq, wq, cin)

    cout_pad = _round_up(max(cout, _LANE), _LANE)
    kc = k * k * k * cin
    wf = w.reshape(kc, cout).astype(jnp.float32)
    wf = jnp.pad(wf, ((0, 0), (0, cout_pad - cout))).astype(compute_dtype)
    rows = ho * wo
    itemsize = jnp.dtype(compute_dtype).itemsize

    inputs = [x6, wf, tparams.astype(jnp.float32)]
    in_specs = [
        pl.BlockSpec((1, s * s, dp, hq, wq, cin), lambda ni, di: (ni, 0, 0, 0, 0, 0)),
        pl.BlockSpec((kc, cout_pad), lambda ni, di: (0, 0)),     # weights resident
        pl.BlockSpec((4, cin), lambda ni, di: (0, 0)),           # BN params resident
    ]
    has_res = residual is not None
    if has_res:
        assert residual.shape == (n, do, ho, wo, cout_pad)
        inputs.append(residual)
        in_specs.append(pl.BlockSpec((1, 1, ho, wo, cout_pad),
                                     lambda ni, di: (ni, di, 0, 0, 0)))

    # Explicit per-chip VMEM budget (double-buffered blocks + scratch + headroom).
    block_bytes = (
        2 * (s * s * dp * hq * wq * max(cin, 8)) * 4
        + 2 * _round_up(kc, 8) * cout_pad * itemsize
        + 2 * 8 * _LANE * 4
        + (2 * _round_up(rows, 8) * cout_pad * 4 if has_res else 0)
        + 2 * _round_up(rows, 8) * cout_pad * 4
        + _round_up(rows, 8) * _round_up(kc, _LANE) * itemsize
    )

    kernel = functools.partial(
        _conv_bn_kernel, k=k, s=s, pad=p, d_in=d_in, h_in=h_in, w_in=w_in,
        ho=ho, wo=wo, cin=cin, relu=relu, has_res=has_res,
        compute_dtype=compute_dtype)

    out = pl.pallas_call(
        kernel,
        grid=(n, do),
        in_specs=in_specs,
        out_specs=pl.BlockSpec((1, 1, ho, wo, cout_pad),
                               lambda ni, di: (ni, di, 0, 0, 0)),
        out_shape=jax.ShapeDtypeStruct((n, do, ho, wo, cout_pad), jnp.float32),
        scratch_shapes=[pltpu.VMEM((rows, kc), compute_dtype)],
        compiler_params=pltpu.CompilerParams(
            dimension_semantics=("parallel", "parallel"),
            vmem_limit_bytes=_vmem_limit(block_bytes),
        ),
    )(*inputs)
    return out                                      # channel-padded; caller strips


# --------------------------------------------------------------------------------------
# PreActBlock3D forward (NDHWC)
# --------------------------------------------------------------------------------------

def preact_block3d_forward(x, w1, w2, wd, *, stride, eps=_EPS,
                           compute_dtype=jnp.float32):
    """x: (N,D,H,W,Cin); w1: (3,3,3,Cin,planes); w2: (3,3,3,planes,planes);
    wd: (1,1,1,Cin,planes) or None.  Returns (N,Do,Ho,Wo,planes)."""
    planes = w1.shape[-1]
    cout_pad = _round_up(max(planes, _LANE), _LANE)

    # bn1 statistics (global batch stats over N*D*H*W).
    m1, s1 = bn_stats(x, eps=eps)
    b1, c1 = s1, -m1 * s1                                       # bn1(x) = b1*x + c1
    ones, zeros = jnp.ones_like(b1), jnp.zeros_like(b1)

    # conv1( relu(bn1(x)) ), stride s, pad 1 -- BN+ReLU fused into the conv.
    t1 = jnp.concatenate([b1, c1, ones, zeros], axis=0)
    o1_pad = conv3d_bn_fused(x, w1, t1, stride=stride, padding=1, relu=True,
                             compute_dtype=compute_dtype)
    o1 = o1_pad[..., :planes]                                   # strip lane padding

    # Shortcut branch.
    if wd is not None:
        # downsample = Conv1x1x1(stride)( BN_d( relu(bn1(x)) ) ); BN_d stats are the
        # batch stats of relu(bn1(x)), computed without materializing it.
        md, sd = bn_stats(x, pre=jnp.concatenate([b1, c1], axis=0), relu=True, eps=eps)
        td = jnp.concatenate([b1, c1, sd, -md * sd], axis=0)
        ds_pad = conv3d_bn_fused(x, wd, td, stride=stride, padding=0, relu=True,
                                 compute_dtype=compute_dtype)
    else:
        # Identity shortcut (stride==1, in_planes==planes): raw x, channel-padded.
        ds_pad = jnp.pad(x, ((0, 0),) * 4 + ((0, cout_pad - planes),)).astype(jnp.float32)

    # conv2( relu(bn2(o1)) ) + shortcut, with the residual add fused in the epilogue.
    m2, s2 = bn_stats(o1, eps=eps)
    t2 = jnp.concatenate([s2, -m2 * s2, jnp.ones_like(s2), jnp.zeros_like(s2)], axis=0)
    out_pad = conv3d_bn_fused(o1, w2, t2, stride=1, padding=1, relu=True,
                              residual=ds_pad, compute_dtype=compute_dtype)
    return out_pad[..., :planes]


# --------------------------------------------------------------------------------------
# Pure-JAX reference (NCDHW, mirrors the PyTorch module in full f32)
# --------------------------------------------------------------------------------------

def reference_ncdhw(x, w1, w2, wd, *, stride, eps=_EPS):
    def bn(v):
        mean = v.mean(axis=(0, 2, 3, 4), keepdims=True)
        var = ((v - mean) ** 2).mean(axis=(0, 2, 3, 4), keepdims=True)
        return (v - mean) * lax.rsqrt(var + eps)

    def conv(v, w, s, p):
        return lax.conv_general_dilated(
            v, w, (s, s, s), [(p, p)] * 3,
            dimension_numbers=("NCDHW", "OIDHW", "NCDHW"),
            precision=lax.Precision.HIGHEST)

    out = jax.nn.relu(bn(x))
    ds = conv(bn(out), wd, stride, 0) if wd is not None else x
    o1 = conv(out, w1, stride, 1)
    return conv(jax.nn.relu(bn(o1)), w2, 1, 1) + ds


if __name__ == "__main__":
    def run_case(n, in_planes, planes, d, h, w, stride, key, compute_dtype, atol, rtol):
        has_ds = (stride != 1) or (in_planes != planes)
        kx, k1, k2, k3 = jax.random.split(key, 4)
        w1_oidhw = 0.1 * jax.random.normal(k1, (planes, in_planes, 3, 3, 3), jnp.float32)
        w2_oidhw = 0.1 * jax.random.normal(k2, (planes, planes, 3, 3, 3), jnp.float32)
        wd_oidhw = (0.1 * jax.random.normal(k3, (planes, in_planes, 1, 1, 1), jnp.float32)
                    if has_ds else None)
        x_ncdhw = jax.random.normal(kx, (n, in_planes, d, h, w), jnp.float32)

        # Boundary transposes to the kernel layout (NDHWC input, DHWIO weights).
        x_ndhwc = jnp.transpose(x_ncdhw, (0, 2, 3, 4, 1))
        w1 = jnp.transpose(w1_oidhw, (2, 3, 4, 1, 0))
        w2 = jnp.transpose(w2_oidhw, (2, 3, 4, 1, 0))
        wd = jnp.transpose(wd_oidhw, (2, 3, 4, 1, 0)) if has_ds else None

        y = preact_block3d_forward(x_ndhwc, w1, w2, wd, stride=stride,
                                   compute_dtype=compute_dtype)
        y = jax.block_until_ready(y)

        ref = reference_ncdhw(x_ncdhw, w1_oidhw, w2_oidhw, wd_oidhw, stride=stride)
        ref = jnp.transpose(ref, (0, 2, 3, 4, 1))
        err = float(jnp.max(jnp.abs(y - ref)))
        assert jnp.allclose(y, ref, atol=atol, rtol=rtol), \
            f"mismatch (stride={stride}, dtype={compute_dtype}): max abs err {err}"

    key = jax.random.PRNGKey(0)
    k_a, k_b = jax.random.split(key)
    # 1) Strided block with 1x1x1 downsample, f32 MXU path (tight parity check).
    run_case(2, 4, 8, 8, 8, 8, 2, k_a, jnp.float32, 2e-3, 2e-3)
    # 2) Identity-shortcut block (stride 1, in_planes == planes), f32 path.
    run_case(2, 8, 8, 8, 8, 8, 1, k_b, jnp.float32, 2e-3, 2e-3)
    # 3) bf16 MXU operands (v6e/v7x fast path), f32 accumulation -- looser tolerance.
    run_case(2, 4, 8, 8, 8, 8, 2, k_a, jnp.bfloat16, 5e-2, 5e-2)

    print("KERNEL_OK")
</pallas_src>

<mosaic_0001>
module attributes {stable_mosaic.version = 11 : i64} {
  func.func @_bn_stats_kernel(%arg0: i32, %arg1: memref<512x4xf32, #tpu.memory_space<vmem>>, %arg2: memref<1x4xf32, #tpu.memory_space<vmem>>, %arg3: memref<1x4xf32, #tpu.memory_space<vmem>>, %arg4: memref<1x4xf32, #tpu.memory_space<vmem>>, %arg5: memref<1x4xf32, #tpu.memory_space<vmem>>) attributes {dimension_semantics = [#tpu.dimension_semantics<arbitrary>], iteration_bounds = array<i64: 2>, scalar_prefetch = 0 : i64, scratch_operands = 2 : i64, tpu.core_type = #tpu.core_type<tc>, window_params = [{transform_indices = @transform_0, window_bounds = array<i64: 512, 4>}, {pipeline_mode = #tpu.pipeline_mode<synchronous>, transform_indices = @transform_1, window_bounds = array<i64: 1, 4>}, {pipeline_mode = #tpu.pipeline_mode<synchronous>, transform_indices = @transform_2, window_bounds = array<i64: 1, 4>}]} {
    %c0_i32 = arith.constant 0 : i32
    %0 = arith.cmpi eq, %arg0, %c0_i32 : i32
    %1 = arith.extui %0 : i1 to i32
    %c0_i32_0 = arith.constant 0 : i32
    %2 = arith.cmpi ne, %1, %c0_i32_0 : i32
    scf.if %2 {
      %cst_12 = arith.constant 0.000000e+00 : f32
      %18 = vector.broadcast %cst_12 : f32 to vector<1x4xf32>
      %c0_13 = arith.constant 0 : index
      %c0_14 = arith.constant 0 : index
      %19 = vector.load %arg4[%c0_13, %c0_14] : memref<1x4xf32, #tpu.memory_space<vmem>>, vector<1x4xf32>
      tpu.vector_store %arg4[%c0_13, %c0_14], %18 {strides = array<i32>} : memref<1x4xf32, #tpu.memory_space<vmem>>, vector<1x4xf32>,
      %cst_15 = arith.constant 0.000000e+00 : f32
      %20 = vector.broadcast %cst_15 : f32 to vector<1x4xf32>
      %c0_16 = arith.constant 0 : index
      %c0_17 = arith.constant 0 : index
      %21 = vector.load %arg5[%c0_16, %c0_17] : memref<1x4xf32, #tpu.memory_space<vmem>>, vector<1x4xf32>
      tpu.vector_store %arg5[%c0_16, %c0_17], %20 {strides = array<i32>} : memref<1x4xf32, #tpu.memory_space<vmem>>, vector<1x4xf32>,
    } else {
    }
    %c0 = arith.constant 0 : index
    %c0_1 = arith.constant 0 : index
    %3 = vector.load %arg1[%c0, %c0_1] : memref<512x4xf32, #tpu.memory_space<vmem>>, vector<512x4xf32>
    %c0_2 = arith.constant 0 : index
    %c0_3 = arith.constant 0 : index
    %4 = vector.load %arg4[%c0_2, %c0_3] : memref<1x4xf32, #tpu.memory_space<vmem>>, vector<1x4xf32>
    %cst = arith.constant dense<0.000000e+00> : vector<4xf32>
    %5 = vector.multi_reduction <add>, %3, %cst [0] : vector<512x4xf32> to vector<4xf32>
    %6 = vector.shape_cast %5 : vector<4xf32> to vector<1x4xf32>
    %7 = arith.addf %4, %6 : vector<1x4xf32>
    %c0_4 = arith.constant 0 : index
    %c0_5 = arith.constant 0 : index
    %8 = vector.load %arg4[%c0_4, %c0_5] : memref<1x4xf32, #tpu.memory_space<vmem>>, vector<1x4xf32>
    tpu.vector_store %arg4[%c0_4, %c0_5], %7 {strides = array<i32>} : memref<1x4xf32, #tpu.memory_space<vmem>>, vector<1x4xf32>,
    %c0_6 = arith.constant 0 : index
    %c0_7 = arith.constant 0 : index
    %9 = vector.load %arg5[%c0_6, %c0_7] : memref<1x4xf32, #tpu.memory_space<vmem>>, vector<1x4xf32>
    %10 = arith.mulf %3, %3 : vector<512x4xf32>
    %cst_8 = arith.constant dense<0.000000e+00> : vector<4xf32>
    %11 = vector.multi_reduction <add>, %10, %cst_8 [0] : vector<512x4xf32> to vector<4xf32>
    %12 = vector.shape_cast %11 : vector<4xf32> to vector<1x4xf32>
    %13 = arith.addf %9, %12 : vector<1x4xf32>
    %c0_9 = arith.constant 0 : index
    %c0_10 = arith.constant 0 : index
    %14 = vector.load %arg5[%c0_9, %c0_10] : memref<1x4xf32, #tpu.memory_space<vmem>>, vector<1x4xf32>
    tpu.vector_store %arg5[%c0_9, %c0_10], %13 {strides = array<i32>} : memref<1x4xf32, #tpu.memory_space<vmem>>, vector<1x4xf32>,
    %c1_i32 = arith.constant 1 : i32
    %15 = arith.cmpi eq, %arg0, %c1_i32 : i32
    %16 = arith.extui %15 : i1 to i32
    %c0_i32_11 = arith.constant 0 : i32
    %17 = arith.cmpi ne, %16, %c0_i32_11 : i32
    scf.if %17 {
      %c0_12 = arith.constant 0 : index
      %c0_13 = arith.constant 0 : index
      %18 = vector.load %arg4[%c0_12, %c0_13] : memref<1x4xf32, #tpu.memory_space<vmem>>, vector<1x4xf32>
      %cst_14 = arith.constant 1.024000e+03 : f32
      %19 = vector.broadcast %cst_14 : f32 to vector<1x4xf32>
      %20 = arith.divf %18, %19 : vector<1x4xf32>
      %c0_15 = arith.constant 0 : index
      %c0_16 = arith.constant 0 : index
      %21 = vector.load %arg5[%c0_15, %c0_16] : memref<1x4xf32, #tpu.memory_space<vmem>>, vector<1x4xf32>
      %cst_17 = arith.constant 1.024000e+03 : f32
      %22 = vector.broadcast %cst_17 : f32 to vector<1x4xf32>
      %23 = arith.divf %21, %22 : vector<1x4xf32>
      %24 = arith.mulf %20, %20 : vector<1x4xf32>
      %25 = arith.subf %23, %24 : vector<1x4xf32>
      %cst_18 = arith.constant 0.000000e+00 : f32
      %26 = vector.broadcast %cst_18 : f32 to vector<1x4xf32>
      %27 = arith.maximumf %25, %26 : vector<1x4xf32>
      %c0_19 = arith.constant 0 : index
      %c0_20 = arith.constant 0 : index
      %28 = vector.load %arg2[%c0_19, %c0_20] : memref<1x4xf32, #tpu.memory_space<vmem>>, vector<1x4xf32>
      tpu.vector_store %arg2[%c0_19, %c0_20], %20 {strides = array<i32>} : memref<1x4xf32, #tpu.memory_space<vmem>>, vector<1x4xf32>,
      %cst_21 = arith.constant 9.99999974E-6 : f32
      %29 = vector.broadcast %cst_21 : f32 to vector<1x4xf32>
      %30 = arith.addf %27, %29 : vector<1x4xf32>
      %31 = math.rsqrt %30 : vector<1x4xf32>
      %c0_22 = arith.constant 0 : index
      %c0_23 = arith.constant 0 : index
      %32 = vector.load %arg3[%c0_22, %c0_23] : memref<1x4xf32, #tpu.memory_space<vmem>>, vector<1x4xf32>
      tpu.vector_store %arg3[%c0_22, %c0_23], %31 {strides = array<i32>} : memref<1x4xf32, #tpu.memory_space<vmem>>, vector<1x4xf32>,
    } else {
    }
    return
  }
  func.func @transform_0(%arg0: i32) -> (i32, i32) {
    %c0_i32 = arith.constant 0 : i32
    %c0_i32_0 = arith.constant 0 : i32
    return %arg0, %c0_i32 : i32, i32
  }
  func.func @transform_1(%arg0: i32) -> (i32, i32) {
    %c0_i32 = arith.constant 0 : i32
    %c0_i32_0 = arith.constant 0 : i32
    %c0_i32_1 = arith.constant 0 : i32
    return %c0_i32, %c0_i32_0 : i32, i32
  }
  func.func @transform_2(%arg0: i32) -> (i32, i32) {
    %c0_i32 = arith.constant 0 : i32
    %c0_i32_0 = arith.constant 0 : i32
    %c0_i32_1 = arith.constant 0 : i32
    return %c0_i32, %c0_i32_0 : i32, i32
  }
}

</mosaic_0001>

<llo_original>
// kernel: tpu_custom_call.1
$region0: #{tpu_custom_call.1}
  #allocation0 [shape = 'u32[]', space=smem, size = 0x4, offset = 0x4, fixed_abs, tag = 'smem constant byte address 0x4 - core index']
  #allocation1 [shape = 'u32[144,128]{1,0:T(1,128)}', space=vmem, size = 0x12000, scoped, tag = 'internal scratch']
  #allocation2 [shape = 'f32[1,4]{1,0:T(1,128)}', space=vmem, size = 0x200, scoped, tag = 'scratch operand']
  #allocation3 [shape = 'f32[1,4]{1,0:T(1,128)}', space=vmem, size = 0x200, scoped, tag = 'scratch operand']
  %s0 = inlined_call_operand.vmem [shape: f32[1024,4], index: 0, kind: input, shape index: {}]
  %s1 = inlined_call_operand.hbm [shape: f32[1,4], index: 1, kind: output, shape index: {0}]
  %s2 = inlined_call_operand.hbm [shape: f32[1,4], index: 2, kind: output, shape index: {1}]
  %3 = xla_tuple %s1, %s2
  %s4 = sld [smem:[#allocation0]]
  $region53: #{tpu_custom_call.1} parent=0
    _
  %s6 = ssub.s32 1, %s4
  %s7 = scalar_select 0, %s6, %s4
  $region1: #{tpu_custom_call.1} parent=0
    #allocation4 [shape = 'u8[512]{0}', space=vmem, size = 0x400, scoped, tag = 'output window, operand 0, single buffered']
    #allocation5 [shape = 's32[2]{0}', space=sflag, size = 0x8, scoped, tag = 'scoped memory for tpu_custom_call.1']
    #allocation6 [shape = 'u8[512]{0}', space=vmem, size = 0x400, scoped, tag = 'output window, operand 1, single buffered']
    #allocation7 [shape = 's32[1]{0}', space=sflag, size = 0x4, scoped, tag = 'scoped memory for tpu_custom_call.1']
    %8 = vsyncpa [#allocation5], 0
    %9 = vsyncpa [#allocation7], 0
    loop: start=0, step=1, limit=4
    $region2: #{tpu_custom_call.1} parent=1 // loop_pre_header
      _
    $region3: #{tpu_custom_call.1} parent=1 // loop_header
      %s11 = sphi 0, %s15
      %p12 = scmp.ge.s32.totalorder %s11, 4
      %s21 = sphi 0, %s23
      %s24 = sphi 0, %s21
      %s25 = sphi 0, %s24
      %s41 = sphi 0, %s25
      %s45 = sphi 0, %s45
      %s47 = sphi 0, %s45
      %s48 = sphi 0, %s47
      %s62 = sphi 0, %s48
      %s66 = sphi 0, %s66
      %s68 = sphi 0, %s66
      %s69 = sphi 0, %s68
      %s83 = sphi 0, %s69
    $region4: #{tpu_custom_call.1} parent=1 // loop_header_branch
      %14 = sbr.rel (%p12) target = $region8
    $region5: #{tpu_custom_call.1} parent=1 // loop_body
      %s16 = ssub.s32 %s11, 1
      %s17 = ssub.s32 %s11, 2
      %s18 = sadd.s32 %s11, 1
      %s19 = ssub.s32 %s11, %s18
      %p20 = scmp.eq.s32.totalorder %s19, 0
      %s22 = sadd.s32 %s21, 1
      %s23 = scalar_select %p20, %s21, %s22
      %p26 = pneg %p20
      %p27 = scmp.eq.s32.totalorder %s11, 1
      %p28 = por %p26, %p27
      %p29 = scmp.ne.s32.totalorder %s21, %s24
      %p30 = scmp.eq.s32.totalorder %s11, 0
      %p31 = por %p29, %p30
      %p32 = scmp.ne.s32.totalorder %s21, %s24
      %p33 = scmp.eq.s32.totalorder %s16, 1
      %p34 = por %p32, %p33
      %p35 = scmp.ne.s32.totalorder %s24, %s25
      %p36 = scmp.eq.s32.totalorder %s16, 0
      %p37 = por %p35, %p36
      %p38 = scmp.ne.s32.totalorder %s24, %s25
      %p39 = scmp.eq.s32.totalorder %s17, 1
      %p40 = por %p38, %p39
      %p42 = scmp.ne.s32.totalorder %s25, %s41
      %p43 = scmp.eq.s32.totalorder %s17, 0
      %p44 = por %p42, %p43
      %s46 = sadd.s32 %s45, 1
      %p49 = scmp.eq.s32.totalorder %s11, 1
      %p50 = scmp.ne.s32.totalorder %s45, %s47
      %p51 = scmp.eq.s32.totalorder %s11, 0
      %p52 = por %p50, %p51
      %p53 = scmp.ne.s32.totalorder %s45, %s47
      %p54 = scmp.eq.s32.totalorder %s16, 1
      %p55 = por %p53, %p54
      %p56 = scmp.ne.s32.totalorder %s47, %s48
      %p57 = scmp.eq.s32.totalorder %s16, 0
      %p58 = por %p56, %p57
      %p59 = scmp.ne.s32.totalorder %s47, %s48
      %p60 = scmp.eq.s32.totalorder %s17, 1
      %p61 = por %p59, %p60
      %p63 = scmp.ne.s32.totalorder %s48, %s62
      %p64 = scmp.eq.s32.totalorder %s17, 0
      %p65 = por %p63, %p64
      %s67 = sadd.s32 %s66, 1
      %p70 = scmp.eq.s32.totalorder %s11, 1
      %p71 = scmp.ne.s32.totalorder %s66, %s68
      %p72 = scmp.eq.s32.totalorder %s11, 0
      %p73 = por %p71, %p72
      %p74 = scmp.ne.s32.totalorder %s66, %s68
      %p75 = scmp.eq.s32.totalorder %s16, 1
      %p76 = por %p74, %p75
      %p77 = scmp.ne.s32.totalorder %s68, %s69
      %p78 = scmp.eq.s32.totalorder %s16, 0
      %p79 = por %p77, %p78
      %p80 = scmp.ne.s32.totalorder %s68, %s69
      %p81 = scmp.eq.s32.totalorder %s17, 1
      %p82 = por %p80, %p81
      %p84 = scmp.ne.s32.totalorder %s69, %s83
      %p85 = scmp.eq.s32.totalorder %s17, 0
      %p86 = por %p84, %p85
      %p87 = scmp.le.s32.totalorder 1, %s11
      %p88 = scmp.lt.s32.totalorder %s11, 3
      %p89 = pnand %p87, %p88
      %p90 = pneg %p89
      // Predicated region
      $region9: #{tpu_custom_call.1} parent=5 // pred_check
        _
      $region10: #{tpu_custom_call.1} parent=5 // pred_check_branch
        %92 = sbr.rel (%p89) target = $region12
      $region11: #{tpu_custom_call.1} parent=5 // pred_region
        %s93 = ssub.s32 %s11, 1
      $region12: #{tpu_custom_call.1} parent=5 // pred_fallthru
        _
      %p94 = scmp.lt.s32.totalorder %s11, 2
      // Predicated region
      $region13: #{tpu_custom_call.1} parent=5 // pred_check
        %p95 = pneg %p94
      $region14: #{tpu_custom_call.1} parent=5 // pred_check_branch
        %97 = sbr.rel (%p95) target = $region16
      $region15: #{tpu_custom_call.1} parent=5 // pred_region
        // Predicated region
        $region17: #{tpu_custom_call.1} parent=15 // pred_check
          %p98 = pneg %p31
        $region18: #{tpu_custom_call.1} parent=15 // pred_check_branch
          %100 = sbr.rel (%p98) target = $region20
        $region19: #{tpu_custom_call.1} parent=15 // pred_region
          %s101 = smul.u32 64, %s11
          %p102 = scmp.lt.s32.totalorder %s101, 127
          %s103 = scalar_select %p102, %s101, 127
          %s104 = smul.addr %s103, 8
          %s105 = scalar_lea.vmem %s0, %s104
          %s106 = smul.u32 64, %s11
        $region20: #{tpu_custom_call.1} parent=15 // pred_fallthru
          _
      $region16: #{tpu_custom_call.1} parent=5 // pred_fallthru
        _
      %p107 = scmp.le.s32.totalorder 1, %s11
      %p108 = scmp.lt.s32.totalorder %s11, 3
      %p109 = pnand %p107, %p108
      %p110 = pneg %p109
      // Predicated region
      $region21: #{tpu_custom_call.1} parent=5 // pred_check
        _
      $region22: #{tpu_custom_call.1} parent=5 // pred_check_branch
        %112 = sbr.rel (%p109) target = $region24
      $region23: #{tpu_custom_call.1} parent=5 // pred_region
        %s113 = ssub.s32 %s11, 1
        %s114 = smul.u32 64, %s16
        %p115 = scmp.lt.s32.totalorder %s114, 127
        %s116 = scalar_select %p115, %s114, 127
        %s117 = smul.addr %s116, 8
        %s118 = scalar_lea.vmem %s0, %s117
        %p119 = pneg %p37
        %p120 = pneg %p34
        %p121 = pneg %p58
        %p122 = pneg %p55
        %p123 = pneg %p79
        %p124 = pneg %p76
        %s125 = smul.u32 64, %s16
        %p126 = scmp.lt.s32.totalorder %s125, 127
        %s127 = scalar_select %p126, %s125, 127
        %s128 = smul.addr %s127, 8
        %s129 = scalar_lea.vmem %s0, %s128
        %s130 = smul.u32 64, %s16
        %p131 = scmp.eq.s32.totalorder %s16, 0
        // Predicated region
        $region25: #{tpu_custom_call.1} parent=23 // pred_check
          %p132 = pneg %p131
        $region26: #{tpu_custom_call.1} parent=23 // pred_check_branch
          %134 = sbr.rel (%p132) target = $region28
        $region27: #{tpu_custom_call.1} parent=23 // pred_region
          %vm135 = vcmask 24576
          %136 = vst.msk [vmem:[#allocation2] sm:$0x1] %vm135, 0.0
          %137 = vst.msk [vmem:[#allocation3] sm:$0x1] %vm135, 0.0
        $region28: #{tpu_custom_call.1} parent=23 // pred_fallthru
          _
        %v138 = vld [vmem:[%s129] sm:$0xff]
        %v139 = vld [vmem:[%s129 + $0x8] sm:$0xff]
        %v140 = vld [vmem:[%s129 + $0x10] sm:$0xff]
        %v141 = vld [vmem:[%s129 + $0x18] sm:$0xff]
        %v142 = vld [vmem:[%s129 + $0x20] sm:$0xff]
        %v143 = vld [vmem:[%s129 + $0x28] sm:$0xff]
        %v144 = vld [vmem:[%s129 + $0x30] sm:$0xff]
        %v145 = vld [vmem:[%s129 + $0x38] sm:$0xff]
        %v146 = vld [vmem:[%s129 + $0x40] sm:$0xff]
        %v147 = vld [vmem:[%s129 + $0x48] sm:$0xff]
        %v148 = vld [vmem:[%s129 + $0x50] sm:$0xff]
        %v149 = vld [vmem:[%s129 + $0x58] sm:$0xff]
        %v150 = vld [vmem:[%s129 + $0x60] sm:$0xff]
        %v151 = vld [vmem:[%s129 + $0x68] sm:$0xff]
        %v152 = vld [vmem:[%s129 + $0x70] sm:$0xff]
        %v153 = vld [vmem:[%s129 + $0x78] sm:$0xff]
        %v154 = vld [vmem:[%s129 + $0x80] sm:$0xff]
        %v155 = vld [vmem:[%s129 + $0x88] sm:$0xff]
        %v156 = vld [vmem:[%s129 + $0x90] sm:$0xff]
        %v157 = vld [vmem:[%s129 + $0x98] sm:$0xff]
        %v158 = vld [vmem:[%s129 + $0xa0] sm:$0xff]
        %v159 = vld [vmem:[%s129 + $0xa8] sm:$0xff]
        %v160 = vld [vmem:[%s129 + $0xb0] sm:$0xff]
        %v161 = vld [vmem:[%s129 + $0xb8] sm:$0xff]
        %v162 = vld [vmem:[%s129 + $0xc0] sm:$0xff]
        %v163 = vld [vmem:[%s129 + $0xc8] sm:$0xff]
        %v164 = vld [vmem:[%s129 + $0xd0] sm:$0xff]
        %v165 = vld [vmem:[%s129 + $0xd8] sm:$0xff]
        %v166 = vld [vmem:[%s129 + $0xe0] sm:$0xff]
        %v167 = vld [vmem:[%s129 + $0xe8] sm:$0xff]
        %v168 = vld [vmem:[%s129 + $0xf0] sm:$0xff]
        %v169 = vld [vmem:[%s129 + $0xf8] sm:$0xff]
        %v170 = vld [vmem:[%s129 + $0x100] sm:$0xff]
        %v171 = vld [vmem:[%s129 + $0x108] sm:$0xff]
        %v172 = vld [vmem:[%s129 + $0x110] sm:$0xff]
        %v173 = vld [vmem:[%s129 + $0x118] sm:$0xff]
        %v174 = vld [vmem:[%s129 + $0x120] sm:$0xff]
        %v175 = vld [vmem:[%s129 + $0x128] sm:$0xff]
        %v176 = vld [vmem:[%s129 + $0x130] sm:$0xff]
        %v177 = vld [vmem:[%s129 + $0x138] sm:$0xff]
        %v178 = vld [vmem:[%s129 + $0x140] sm:$0xff]
        %v179 = vld [vmem:[%s129 + $0x148] sm:$0xff]
        %v180 = vld [vmem:[%s129 + $0x150] sm:$0xff]
        %v181 = vld [vmem:[%s129 + $0x158] sm:$0xff]
        %v182 = vld [vmem:[%s129 + $0x160] sm:$0xff]
        %v183 = vld [vmem:[%s129 + $0x168] sm:$0xff]
        %v184 = vld [vmem:[%s129 + $0x170] sm:$0xff]
        %v185 = vld [vmem:[%s129 + $0x178] sm:$0xff]
        %v186 = vld [vmem:[%s129 + $0x180] sm:$0xff]
        %v187 = vld [vmem:[%s129 + $0x188] sm:$0xff]
        %v188 = vld [vmem:[%s129 + $0x190] sm:$0xff]
        %v189 = vld [vmem:[%s129 + $0x198] sm:$0xff]
        %v190 = vld [vmem:[%s129 + $0x1a0] sm:$0xff]
        %v191 = vld [vmem:[%s129 + $0x1a8] sm:$0xff]
        %v192 = vld [vmem:[%s129 + $0x1b0] sm:$0xff]
        %v193 = vld [vmem:[%s129 + $0x1b8] sm:$0xff]
        %v194 = vld [vmem:[%s129 + $0x1c0] sm:$0xff]
        %v195 = vld [vmem:[%s129 + $0x1c8] sm:$0xff]
        %v196 = vld [vmem:[%s129 + $0x1d0] sm:$0xff]
        %v197 = vld [vmem:[%s129 + $0x1d8] sm:$0xff]
        %v198 = vld [vmem:[%s129 + $0x1e0] sm:$0xff]
        %v199 = vld [vmem:[%s129 + $0x1e8] sm:$0xff]
        %v200 = vld [vmem:[%s129 + $0x1f0] sm:$0xff]
        %v201 = vld [vmem:[%s129 + $0x1f8] sm:$0xff]
        %v202 = vld [vmem:[#allocation2] sm:$0x1]
        %vm203 = vcmask 31744
        %v204 = vsel %vm203, %v138, 0.0
        %v205 = vsel %vm203, %v139, 0.0
        %v206 = vadd.f32 %v204, %v205
        %v207 = vsel %vm203, %v140, 0.0
        %v208 = vadd.f32 %v206, %v207
        %v209 = vsel %vm203, %v141, 0.0
        %v210 = vadd.f32 %v208, %v209
        %v211 = vsel %vm203, %v142, 0.0
        %v212 = vadd.f32 %v210, %v211
        %v213 = vsel %vm203, %v143, 0.0
        %v214 = vadd.f32 %v212, %v213
        %v215 = vsel %vm203, %v144, 0.0
        %v216 = vadd.f32 %v214, %v215
        %v217 = vsel %vm203, %v145, 0.0
        %v218 = vadd.f32 %v216, %v217
        %v219 = vsel %vm203, %v146, 0.0
        %v220 = vadd.f32 %v218, %v219
        %v221 = vsel %vm203, %v147, 0.0
        %v222 = vadd.f32 %v220, %v221
        %v223 = vsel %vm203, %v148, 0.0
        %v224 = vadd.f32 %v222, %v223
        %v225 = vsel %vm203, %v149, 0.0
        %v226 = vadd.f32 %v224, %v225
        %v227 = vsel %vm203, %v150, 0.0
        %v228 = vadd.f32 %v226, %v227
        %v229 = vsel %vm203, %v151, 0.0
        %v230 = vadd.f32 %v228, %v229
        %v231 = vsel %vm203, %v152, 0.0
        %v232 = vadd.f32 %v230, %v231
        %v233 = vsel %vm203, %v153, 0.0
        %v234 = vadd.f32 %v232, %v233
        %v235 = vsel %vm203, %v154, 0.0
        %v236 = vadd.f32 %v234, %v235
        %v237 = vsel %vm203, %v155, 0.0
        %v238 = vadd.f32 %v236, %v237
        %v239 = vsel %vm203, %v156, 0.0
        %v240 = vadd.f32 %v238, %v239
        %v241 = vsel %vm203, %v157, 0.0
        %v242 = vadd.f32 %v240, %v241
        %v243 = vsel %vm203, %v158, 0.0
        %v244 = vadd.f32 %v242, %v243
        %v245 = vsel %vm203, %v159, 0.0
        %v246 = vadd.f32 %v244, %v245
        %v247 = vsel %vm203, %v160, 0.0
        %v248 = vadd.f32 %v246, %v247
        %v249 = vsel %vm203, %v161, 0.0
        %v250 = vadd.f32 %v248, %v249
        %v251 = vsel %vm203, %v162, 0.0
        %v252 = vadd.f32 %v250, %v251
        %v253 = vsel %vm203, %v163, 0.0
        %v254 = vadd.f32 %v252, %v253
        %v255 = vsel %vm203, %v164, 0.0
        %v256 = vadd.f32 %v254, %v255
        %v257 = vsel %vm203, %v165, 0.0
        %v258 = vadd.f32 %v256, %v257
        %v259 = vsel %vm203, %v166, 0.0
        %v260 = vadd.f32 %v258, %v259
        %v261 = vsel %vm203, %v167, 0.0
        %v262 = vadd.f32 %v260, %v261
        %v263 = vsel %vm203, %v168, 0.0
        %v264 = vadd.f32 %v262, %v263
        %v265 = vsel %vm203, %v169, 0.0
        %v266 = vadd.f32 %v264, %v265
        %v267 = vsel %vm203, %v170, 0.0
        %v268 = vadd.f32 %v266, %v267
        %v269 = vsel %vm203, %v171, 0.0
        %v270 = vadd.f32 %v268, %v269
        %v271 = vsel %vm203, %v172, 0.0
        %v272 = vadd.f32 %v270, %v271
        %v273 = vsel %vm203, %v173, 0.0
        %v274 = vadd.f32 %v272, %v273
        %v275 = vsel %vm203, %v174, 0.0
        %v276 = vadd.f32 %v274, %v275
        %v277 = vsel %vm203, %v175, 0.0
        %v278 = vadd.f32 %v276, %v277
        %v279 = vsel %vm203, %v176, 0.0
        %v280 = vadd.f32 %v278, %v279
        %v281 = vsel %vm203, %v177, 0.0
        %v282 = vadd.f32 %v280, %v281
        %v283 = vsel %vm203, %v178, 0.0
        %v284 = vadd.f32 %v282, %v283
        %v285 = vsel %vm203, %v179, 0.0
        %v286 = vadd.f32 %v284, %v285
        %v287 = vsel %vm203, %v180, 0.0
        %v288 = vadd.f32 %v286, %v287
        %v289 = vsel %vm203, %v181, 0.0
        %v290 = vadd.f32 %v288, %v289
        %v291 = vsel %vm203, %v182, 0.0
        %v292 = vadd.f32 %v290, %v291
        %v293 = vsel %vm203, %v183, 0.0
        %v294 = vadd.f32 %v292, %v293
        %v295 = vsel %vm203, %v184, 0.0
        %v296 = vadd.f32 %v294, %v295
        %v297 = vsel %vm203, %v185, 0.0
        %v298 = vadd.f32 %v296, %v297
        %v299 = vsel %vm203, %v186, 0.0
        %v300 = vadd.f32 %v298, %v299
        %v301 = vsel %vm203, %v187, 0.0
        %v302 = vadd.f32 %v300, %v301
        %v303 = vsel %vm203, %v188, 0.0
        %v304 = vadd.f32 %v302, %v303
        %v305 = vsel %vm203, %v189, 0.0
        %v306 = vadd.f32 %v304, %v305
        %v307 = vsel %vm203, %v190, 0.0
        %v308 = vadd.f32 %v306, %v307
        %v309 = vsel %vm203, %v191, 0.0
        %v310 = vadd.f32 %v308, %v309
        %v311 = vsel %vm203, %v192, 0.0
        %v312 = vadd.f32 %v310, %v311
        %v313 = vsel %vm203, %v193, 0.0
        %v314 = vadd.f32 %v312, %v313
        %v315 = vsel %vm203, %v194, 0.0
        %v316 = vadd.f32 %v314, %v315
        %v317 = vsel %vm203, %v195, 0.0
        %v318 = vadd.f32 %v316, %v317
        %v319 = vsel %vm203, %v196, 0.0
        %v320 = vadd.f32 %v318, %v319
        %v321 = vsel %vm203, %v197, 0.0
        %v322 = vadd.f32 %v320, %v321
        %v323 = vsel %vm203, %v198, 0.0
        %v324 = vadd.f32 %v322, %v323
        %v325 = vsel %vm203, %v199, 0.0
        %v326 = vadd.f32 %v324, %v325
        %v327 = vsel %vm203, %v200, 0.0
        %v328 = vadd.f32 %v326, %v327
        %v329 = vsel %vm203, %v201, 0.0
        %v330 = vadd.f32 %v328, %v329
        %v331 = vrot.slane %v330, 4
        %v332 = vadd.f32 %v330, %v331
        %v333 = vrot.slane %v332, 2
        %v334 = vadd.f32 %v332, %v333
        %v335 = vrot.slane %v334, 1
        %v336 = vadd.f32 %v334, %v335
        %v337 = vadd.f32 %v202, %v336
        %vm338 = vcmask 24576
        %339 = vst.msk [vmem:[#allocation2] sm:$0x1] %vm338, %v337
        %v340 = vld [vmem:[#allocation3] sm:$0x1]
        %v341 = vmul.f32 %v138, %v138
        %v342 = vmul.f32 %v139, %v139
        %v343 = vmul.f32 %v140, %v140
        %v344 = vmul.f32 %v141, %v141
        %v345 = vmul.f32 %v142, %v142
        %v346 = vmul.f32 %v143, %v143
        %v347 = vmul.f32 %v144, %v144
        %v348 = vmul.f32 %v145, %v145
        %v349 = vmul.f32 %v146, %v146
        %v350 = vmul.f32 %v147, %v147
        %v351 = vmul.f32 %v148, %v148
        %v352 = vmul.f32 %v149, %v149
        %v353 = vmul.f32 %v150, %v150
        %v354 = vmul.f32 %v151, %v151
        %v355 = vmul.f32 %v152, %v152
        %v356 = vmul.f32 %v153, %v153
        %v357 = vmul.f32 %v154, %v154
        %v358 = vmul.f32 %v155, %v155
        %v359 = vmul.f32 %v156, %v156
        %v360 = vmul.f32 %v157, %v157
        %v361 = vmul.f32 %v158, %v158
        %v362 = vmul.f32 %v159, %v159
        %v363 = vmul.f32 %v160, %v160
        %v364 = vmul.f32 %v161, %v161
        %v365 = vmul.f32 %v162, %v162
        %v366 = vmul.f32 %v163, %v163
        %v367 = vmul.f32 %v164, %v164
        %v368 = vmul.f32 %v165, %v165
        %v369 = vmul.f32 %v166, %v166
        %v370 = vmul.f32 %v167, %v167
        %v371 = vmul.f32 %v168, %v168
        %v372 = vmul.f32 %v169, %v169
        %v373 = vmul.f32 %v170, %v170
        %v374 = vmul.f32 %v171, %v171
        %v375 = vmul.f32 %v172, %v172
        %v376 = vmul.f32 %v173, %v173
        %v377 = vmul.f32 %v174, %v174
        %v378 = vmul.f32 %v175, %v175
        %v379 = vmul.f32 %v176, %v176
        %v380 = vmul.f32 %v177, %v177
        %v381 = vmul.f32 %v178, %v178
        %v382 = vmul.f32 %v179, %v179
        %v383 = vmul.f32 %v180, %v180
        %v384 = vmul.f32 %v181, %v181
        %v385 = vmul.f32 %v182, %v182
        %v386 = vmul.f32 %v183, %v183
        %v387 = vmul.f32 %v184, %v184
        %v388 = vmul.f32 %v185, %v185
        %v389 = vmul.f32 %v186, %v186
        %v390 = vmul.f32 %v187, %v187
        %v391 = vmul.f32 %v188, %v188
        %v392 = vmul.f32 %v189, %v189
        %v393 = vmul.f32 %v190, %v190
        %v394 = vmul.f32 %v191, %v191
        %v395 = vmul.f32 %v192, %v192
        %v396 = vmul.f32 %v193, %v193
        %v397 = vmul.f32 %v194, %v194
        %v398 = vmul.f32 %v195, %v195
        %v399 = vmul.f32 %v196, %v196
        %v400 = vmul.f32 %v197, %v197
        %v401 = vmul.f32 %v198, %v198
        %v402 = vmul.f32 %v199, %v199
        %v403 = vmul.f32 %v200, %v200
        %v404 = vmul.f32 %v201, %v201
        %v405 = vsel %vm203, %v341, 0.0
        %v406 = vsel %vm203, %v342, 0.0
        %v407 = vadd.f32 %v405, %v406
        %v408 = vsel %vm203, %v343, 0.0
        %v409 = vadd.f32 %v407, %v408
        %v410 = vsel %vm203, %v344, 0.0
        %v411 = vadd.f32 %v409, %v410
        %v412 = vsel %vm203, %v345, 0.0
        %v413 = vadd.f32 %v411, %v412
        %v414 = vsel %vm203, %v346, 0.0
        %v415 = vadd.f32 %v413, %v414
        %v416 = vsel %vm203, %v347, 0.0
        %v417 = vadd.f32 %v415, %v416
        %v418 = vsel %vm203, %v348, 0.0
        %v419 = vadd.f32 %v417, %v418
        %v420 = vsel %vm203, %v349, 0.0
        %v421 = vadd.f32 %v419, %v420
        %v422 = vsel %vm203, %v350, 0.0
        %v423 = vadd.f32 %v421, %v422
        %v424 = vsel %vm203, %v351, 0.0
        %v425 = vadd.f32 %v423, %v424
        %v426 = vsel %vm203, %v352, 0.0
        %v427 = vadd.f32 %v425, %v426
        %v428 = vsel %vm203, %v353, 0.0
        %v429 = vadd.f32 %v427, %v428
        %v430 = vsel %vm203, %v354, 0.0
        %v431 = vadd.f32 %v429, %v430
        %v432 = vsel %vm203, %v355, 0.0
        %v433 = vadd.f32 %v431, %v432
        %v434 = vsel %vm203, %v356, 0.0
        %v435 = vadd.f32 %v433, %v434
        %v436 = vsel %vm203, %v357, 0.0
        %v437 = vadd.f32 %v435, %v436
        %v438 = vsel %vm203, %v358, 0.0
        %v439 = vadd.f32 %v437, %v438
        %v440 = vsel %vm203, %v359, 0.0
        %v441 = vadd.f32 %v439, %v440
        %v442 = vsel %vm203, %v360, 0.0
        %v443 = vadd.f32 %v441, %v442
        %v444 = vsel %vm203, %v361, 0.0
        %v445 = vadd.f32 %v443, %v444
        %v446 = vsel %vm203, %v362, 0.0
        %v447 = vadd.f32 %v445, %v446
        %v448 = vsel %vm203, %v363, 0.0
        %v449 = vadd.f32 %v447, %v448
        %v450 = vsel %vm203, %v364, 0.0
        %v451 = vadd.f32 %v449, %v450
        %v452 = vsel %vm203, %v365, 0.0
        %v453 = vadd.f32 %v451, %v452
        %v454 = vsel %vm203, %v366, 0.0
        %v455 = vadd.f32 %v453, %v454
        %v456 = vsel %vm203, %v367, 0.0
        %v457 = vadd.f32 %v455, %v456
        %v458 = vsel %vm203, %v368, 0.0
        %v459 = vadd.f32 %v457, %v458
        %v460 = vsel %vm203, %v369, 0.0
        %v461 = vadd.f32 %v459, %v460
        %v462 = vsel %vm203, %v370, 0.0
        %v463 = vadd.f32 %v461, %v462
        %v464 = vsel %vm203, %v371, 0.0
        %v465 = vadd.f32 %v463, %v464
        %v466 = vsel %vm203, %v372, 0.0
        %v467 = vadd.f32 %v465, %v466
        %v468 = vsel %vm203, %v373, 0.0
        %v469 = vadd.f32 %v467, %v468
        %v470 = vsel %vm203, %v374, 0.0
        %v471 = vadd.f32 %v469, %v470
        %v472 = vsel %vm203, %v375, 0.0
        %v473 = vadd.f32 %v471, %v472
        %v474 = vsel %vm203, %v376, 0.0
        %v475 = vadd.f32 %v473, %v474
        %v476 = vsel %vm203, %v377, 0.0
        %v477 = vadd.f32 %v475, %v476
        %v478 = vsel %vm203, %v378, 0.0
        %v479 = vadd.f32 %v477, %v478
        %v480 = vsel %vm203, %v379, 0.0
        %v481 = vadd.f32 %v479, %v480
        %v482 = vsel %vm203, %v380, 0.0
        %v483 = vadd.f32 %v481, %v482
        %v484 = vsel %vm203, %v381, 0.0
        %v485 = vadd.f32 %v483, %v484
        %v486 = vsel %vm203, %v382, 0.0
        %v487 = vadd.f32 %v485, %v486
        %v488 = vsel %vm203, %v383, 0.0
        %v489 = vadd.f32 %v487, %v488
        %v490 = vsel %vm203, %v384, 0.0
        %v491 = vadd.f32 %v489, %v490
        %v492 = vsel %vm203, %v385, 0.0
        %v493 = vadd.f32 %v491, %v492
        %v494 = vsel %vm203, %v386, 0.0
        %v495 = vadd.f32 %v493, %v494
        %v496 = vsel %vm203, %v387, 0.0
        %v497 = vadd.f32 %v495, %v496
        %v498 = vsel %vm203, %v388, 0.0
        %v499 = vadd.f32 %v497, %v498
        %v500 = vsel %vm203, %v389, 0.0
        %v501 = vadd.f32 %v499, %v500
        %v502 = vsel %vm203, %v390, 0.0
        %v503 = vadd.f32 %v501, %v502
        %v504 = vsel %vm203, %v391, 0.0
        %v505 = vadd.f32 %v503, %v504
        %v506 = vsel %vm203, %v392, 0.0
        %v507 = vadd.f32 %v505, %v506
        %v508 = vsel %vm203, %v393, 0.0
        %v509 = vadd.f32 %v507, %v508
        %v510 = vsel %vm203, %v394, 0.0
        %v511 = vadd.f32 %v509, %v510
        %v512 = vsel %vm203, %v395, 0.0
        %v513 = vadd.f32 %v511, %v512
        %v514 = vsel %vm203, %v396, 0.0
        %v515 = vadd.f32 %v513, %v514
        %v516 = vsel %vm203, %v397, 0.0
        %v517 = vadd.f32 %v515, %v516
        %v518 = vsel %vm203, %v398, 0.0
        %v519 = vadd.f32 %v517, %v518
        %v520 = vsel %vm203, %v399, 0.0
        %v521 = vadd.f32 %v519, %v520
        %v522 = vsel %vm203, %v400, 0.0
        %v523 = vadd.f32 %v521, %v522
        %v524 = vsel %vm203, %v401, 0.0
        %v525 = vadd.f32 %v523, %v524
        %v526 = vsel %vm203, %v402, 0.0
        %v527 = vadd.f32 %v525, %v526
        %v528 = vsel %vm203, %v403, 0.0
        %v529 = vadd.f32 %v527, %v528
        %v530 = vsel %vm203, %v404, 0.0
        %v531 = vadd.f32 %v529, %v530
        %v532 = vrot.slane %v531, 4
        %v533 = vadd.f32 %v531, %v532
        %v534 = vrot.slane %v533, 2
        %v535 = vadd.f32 %v533, %v534
        %v536 = vrot.slane %v535, 1
        %v537 = vadd.f32 %v535, %v536
        %v538 = vadd.f32 %v340, %v537
        %539 = vst.msk [vmem:[#allocation3] sm:$0x1] %vm338, %v538
        %p540 = scmp.eq.s32.totalorder %s16, 1
        // Predicated region
        $region29: #{tpu_custom_call.1} parent=23 // pred_check
          %p541 = pneg %p540
        $region30: #{tpu_custom_call.1} parent=23 // pred_check_branch
          %543 = sbr.rel (%p541) target = $region32
        $region31: #{tpu_custom_call.1} parent=23 // pred_region
          %v544 = vld [vmem:[#allocation2] sm:$0x1]
          %v545 = vrcp.pop 1024.0
          %v546 = vmul.f32 %v544, %v545
          %v547 = vld [vmem:[#allocation3] sm:$0x1]
          %v548 = vmul.f32 %v547, %v545
          %v549 = vmul.f32 %v546, %v546
          %v550 = vsub.f32 %v548, %v549
          %v551 = vmax.f32 %v550, 0.0
          %552 = vst.msk [vmem:[#allocation4] sm:$0x1] %vm338, %v546
          %v553 = vadd.f32 %v551, 1e-05
          %v554 = vrsqrt.pop %v553
          %555 = vst.msk [vmem:[#allocation6] sm:$0x1] %vm338, %v554
        $region32: #{tpu_custom_call.1} parent=23 // pred_fallthru
          _
        // Predicated region
        $region33: #{tpu_custom_call.1} parent=23 // pred_check
          %p556 = pneg %p55
        $region34: #{tpu_custom_call.1} parent=23 // pred_check_branch
          %558 = sbr.rel (%p556) target = $region36
        $region35: #{tpu_custom_call.1} parent=23 // pred_region
          %s560 = ssub.s32 16, 16
          %561 = vsyncadd [#allocation5], %s560
          %s563 = sshll.u32 [#allocation4], 4
          %s564 = int_to_ptr.vmem [resolvable:$true] %s563
          %566 = dma.vmem_to_hbm [thread:$0]  %s564, 16, %s1, [#allocation5]
        $region36: #{tpu_custom_call.1} parent=23 // pred_fallthru
          _
        // Predicated region
        $region37: #{tpu_custom_call.1} parent=23 // pred_check
          %p567 = pneg %p76
        $region38: #{tpu_custom_call.1} parent=23 // pred_check_branch
          %569 = sbr.rel (%p567) target = $region40
        $region39: #{tpu_custom_call.1} parent=23 // pred_region
          %s571 = ssub.s32 16, 16
          %572 = vsyncadd [#allocation7], %s571
          %s574 = sshll.u32 [#allocation6], 4
          %s575 = int_to_ptr.vmem [resolvable:$true] %s574
          %577 = dma.vmem_to_hbm [thread:$0]  %s575, 16, %s2, [#allocation7]
        $region40: #{tpu_custom_call.1} parent=23 // pred_fallthru
          _
        // Predicated region
        $region41: #{tpu_custom_call.1} parent=23 // pred_check
          %p578 = pneg %p55
        $region42: #{tpu_custom_call.1} parent=23 // pred_check_branch
          %580 = sbr.rel (%p578) target = $region44
        $region43: #{tpu_custom_call.1} parent=23 // pred_region
          %581 = dma.done [#allocation5], 16
        $region44: #{tpu_custom_call.1} parent=23 // pred_fallthru
          _
        // Predicated region
        $region45: #{tpu_custom_call.1} parent=23 // pred_check
          %p582 = pneg %p76
        $region46: #{tpu_custom_call.1} parent=23 // pred_check_branch
          %584 = sbr.rel (%p582) target = $region48
        $region47: #{tpu_custom_call.1} parent=23 // pred_region
          %585 = dma.done [#allocation7], 16
        $region48: #{tpu_custom_call.1} parent=23 // pred_fallthru
          _
      $region24: #{tpu_custom_call.1} parent=5 // pred_fallthru
        _
      %p586 = scmp.le.s32.totalorder 2, %s11
      // Predicated region
      $region49: #{tpu_custom_call.1} parent=5 // pred_check
        %p587 = pneg %p586
      $region50: #{tpu_custom_call.1} parent=5 // pred_check_branch
        %589 = sbr.rel (%p587) target = $region52
      $region51: #{tpu_custom_call.1} parent=5 // pred_region
        %s590 = ssub.s32 %s11, 2
      $region52: #{tpu_custom_call.1} parent=5 // pred_fallthru
        _
    $region6: #{tpu_custom_call.1} parent=1 // loop_footer
      %s15 = sadd.s32 1, %s11
    $region7: #{tpu_custom_call.1} parent=1 // loop_footer_branch
      %10 = sbr.rel target = $region3
    $region8: #{tpu_custom_call.1} parent=1 // loop_exit
      _
    %591 = vsyncpa [#allocation5], 1
    %s592 = scalar_lea.sflag [#allocation5], 1
    %593 = vsyncpa %s592, 1
    %594 = vsyncpa [#allocation7], 1

</llo_original>
